<compile_context>
chip_gen: v7x
topology: tpu7x:2x2x1
jax: 0.10.0
libtpu: 0.0.40
codegen_flags: <defaults>
</compile_context>

<pallas_src>
import functools

import jax
import jax.numpy as jnp
from jax import lax
from jax.experimental import pallas as pl
from jax.experimental.pallas import tpu as pltpu


def conv_block_1d(x, weight, bias, gamma, beta, running_mean, running_var,
                  *, stride, padding, dilation, groups, eps=1e-5):
    """Forward pass of ConvBlock1D (inference mode).

    x:      (N, C_in, L)             float32
    weight: (C_out, C_in//groups, K) float32
    Returns (N, C_out, L_out)        float32
    """
    assert groups == 1, "TODO(synk): grouped conv not implemented"
    N, C_in, L = x.shape
    C_out, C_in_w, K = weight.shape
    assert C_in_w == C_in
    L_out = (L + 2 * padding - dilation * (K - 1) - 1) // stride + 1
    L_pad = L + 2 * padding

    # ---- wrapper prep: zero-pad + bf16 cast only (no im2col in HBM) ----
    x_pad = jnp.pad(x, ((0, 0), (0, 0), (padding, padding))).astype(jnp.bfloat16)
    w = jnp.transpose(weight, (2, 0, 1)).astype(jnp.bfloat16)       # (K, C_out, C_in)

    # BN (eval mode) as f32 per-channel scale/shift applied on the accumulator:
    #   y = scale*conv + (scale*(bias - mean) + beta),  scale = gamma/sqrt(var+eps)
    scale = (gamma / jnp.sqrt(running_var + eps)).astype(jnp.float32)
    shift = (scale * (bias - running_mean) + beta).astype(jnp.float32)
    scale = scale.reshape(C_out, 1)
    shift = shift.reshape(C_out, 1)

    # ---- batch packing: target ~1-2 MiB per block, keep >=~8 grid steps if N allows ----
    bytes_per_n = C_in * L_pad * 2 + C_out * L_out * 4      # bf16 in + f32 out
    B = max(1, min(8, (2 << 20) // max(bytes_per_n, 1), pl.cdiv(N, 8)))
    grid = (pl.cdiv(N, B),)

    def kernel(x_ref, w_ref, scale_ref, shift_ref, out_ref):
        # x_ref:     (B, C_in, L_pad)   bf16
        # w_ref:     (K, C_out, C_in)   bf16
        # scale_ref: (C_out, 1)         f32
        # shift_ref: (C_out, 1)         f32
        # out_ref:   (B, C_out, L_out)  f32
        for b in range(B):                       # static unroll (B <= 8)
            acc = jnp.zeros((C_out, L_out), jnp.float32)
            for k in range(K):                   # in-kernel im2col: shifted views
                s = k * dilation
                if stride == 1:
                    tap = x_ref[b, :, pl.ds(s, L_out)]
                else:
                    tap = x_ref[b, :, pl.ds(s, L_out, stride)]
                acc = acc + jnp.dot(w_ref[k], tap,
                                    preferred_element_type=jnp.float32)
            y = acc * scale_ref[...] + shift_ref[...]
            out_ref[b] = jnp.maximum(y, 0.0).astype(out_ref.dtype)

    out = pl.pallas_call(
        kernel,
        out_shape=jax.ShapeDtypeStruct((N, C_out, L_out), jnp.float32),
        grid=grid,
        in_specs=[
            pl.BlockSpec((B, C_in, L_pad), lambda n: (n, 0, 0)),
            pl.BlockSpec((K, C_out, C_in), lambda n: (0, 0, 0)),
            pl.BlockSpec((C_out, 1), lambda n: (0, 0)),
            pl.BlockSpec((C_out, 1), lambda n: (0, 0)),
        ],
        out_specs=pl.BlockSpec((B, C_out, L_out), lambda n: (n, 0, 0)),
        compiler_params=pltpu.CompilerParams(
            dimension_semantics=("parallel",)),
    )(x_pad, w, scale, shift)

    # Dropout(p) is identity at inference time.
    return out


if __name__ == "__main__":
    # Module hyper-params (the `params` dict of ConvBlock1D).
    params = dict(in_channels=4, out_channels=8, kernel_size=3,
                  stride=1, padding=1, dilation=1, groups=1, drop_prob=0.1)

    N, C_in, L = 2, params["in_channels"], 16
    C_out, K = params["out_channels"], params["kernel_size"]

    key = jax.random.PRNGKey(0)
    kx, kw, kb, kg, kbe, km, kv = jax.random.split(key, 7)
    x = jax.random.normal(kx, (N, C_in, L), dtype=jnp.float32)
    weight = 0.1 * jax.random.normal(kw, (C_out, C_in, K), dtype=jnp.float32)
    bias = 0.1 * jax.random.normal(kb, (C_out,), dtype=jnp.float32)
    gamma = 1.0 + 0.05 * jax.random.normal(kg, (C_out,), dtype=jnp.float32)
    beta = 0.05 * jax.random.normal(kbe, (C_out,), dtype=jnp.float32)
    running_mean = 0.1 * jax.random.normal(km, (C_out,), dtype=jnp.float32)
    running_var = jnp.abs(jax.random.normal(kv, (C_out,),
                                            dtype=jnp.float32)) + 0.5

    fwd = functools.partial(
        conv_block_1d,
        stride=params["stride"], padding=params["padding"],
        dilation=params["dilation"], groups=params["groups"])

    out = fwd(x, weight, bias, gamma, beta, running_mean, running_var)
    out = jax.block_until_ready(out)

    # Sanity check against a pure-JAX f32 reference (lax conv + BN + ReLU).
    z = lax.conv_general_dilated(
        x, weight, window_strides=(params["stride"],),
        padding=[(params["padding"], params["padding"])],
        rhs_dilation=(params["dilation"],),
        dimension_numbers=("NCH", "OIH", "NCH"),
        feature_group_count=params["groups"]) + bias[None, :, None]
    ref = jnp.maximum(
        gamma[None, :, None] * (z - running_mean[None, :, None])
        / jnp.sqrt(running_var[None, :, None] + 1e-5) + beta[None, :, None],
        0.0)
    assert out.shape == ref.shape
    # Tolerance relaxed vs the f32 reference because x and the conv weight are
    # bf16 on the MXU; BN scale/shift and accumulation are exact f32.
    assert jnp.allclose(out, ref, atol=5e-2, rtol=5e-2)

    print("KERNEL_OK")
</pallas_src>

<mosaic_0001>
module attributes {stable_mosaic.version = 11 : i64} {
  func.func @kernel(%arg0: i32, %arg1: memref<1x4x18xbf16, #tpu.memory_space<vmem>>, %arg2: memref<3x8x4xbf16, #tpu.memory_space<vmem>>, %arg3: memref<8x1xf32, #tpu.memory_space<vmem>>, %arg4: memref<8x1xf32, #tpu.memory_space<vmem>>, %arg5: memref<1x8x16xf32, #tpu.memory_space<vmem>>) attributes {dimension_semantics = [#tpu.dimension_semantics<parallel>], iteration_bounds = array<i64: 2>, scalar_prefetch = 0 : i64, scratch_operands = 0 : i64, tpu.core_type = #tpu.core_type<tc>, window_params = [{transform_indices = @transform_0, window_bounds = array<i64: 1, 4, 18>}, {pipeline_mode = #tpu.pipeline_mode<synchronous>, transform_indices = @transform_1, window_bounds = array<i64: 3, 8, 4>}, {pipeline_mode = #tpu.pipeline_mode<synchronous>, transform_indices = @transform_2, window_bounds = array<i64: 8, 1>}, {pipeline_mode = #tpu.pipeline_mode<synchronous>, transform_indices = @transform_3, window_bounds = array<i64: 8, 1>}, {transform_indices = @transform_4, window_bounds = array<i64: 1, 8, 16>}]} {
    %cst = arith.constant 0.000000e+00 : f32
    %0 = vector.broadcast %cst : f32 to vector<8x16xf32>
    %c0 = arith.constant 0 : index
    %c0_0 = arith.constant 0 : index
    %c0_1 = arith.constant 0 : index
    %1 = vector.load %arg1[%c0, %c0_0, %c0_1] : memref<1x4x18xbf16, #tpu.memory_space<vmem>>, vector<1x4x16xbf16>
    %2 = vector.shape_cast %1 : vector<1x4x16xbf16> to vector<4x16xbf16>
    %c0_2 = arith.constant 0 : index
    %c0_3 = arith.constant 0 : index
    %c0_4 = arith.constant 0 : index
    %3 = vector.load %arg2[%c0_2, %c0_3, %c0_4] : memref<3x8x4xbf16, #tpu.memory_space<vmem>>, vector<1x8x4xbf16>
    %4 = vector.shape_cast %3 : vector<1x8x4xbf16> to vector<8x4xbf16>
    %cst_5 = arith.constant dense<0.000000e+00> : vector<8x16xf32>
    %5 = tpu.matmul %4, %2, %cst_5 {dimension_numbers = #tpu.dot_dimension_numbers<[1], [0], [0], [1], [0, 0, 1, 1], [], []>} : vector<8x4xbf16>, vector<4x16xbf16>, vector<8x16xf32> -> vector<8x16xf32>
    %6 = arith.addf %0, %5 : vector<8x16xf32>
    %c0_6 = arith.constant 0 : index
    %c0_7 = arith.constant 0 : index
    %c1 = arith.constant 1 : index
    %7 = vector.load %arg1[%c0_6, %c0_7, %c1] : memref<1x4x18xbf16, #tpu.memory_space<vmem>>, vector<1x4x16xbf16>
    %8 = vector.shape_cast %7 : vector<1x4x16xbf16> to vector<4x16xbf16>
    %c1_8 = arith.constant 1 : index
    %c0_9 = arith.constant 0 : index
    %c0_10 = arith.constant 0 : index
    %9 = vector.load %arg2[%c1_8, %c0_9, %c0_10] : memref<3x8x4xbf16, #tpu.memory_space<vmem>>, vector<1x8x4xbf16>
    %10 = vector.shape_cast %9 : vector<1x8x4xbf16> to vector<8x4xbf16>
    %cst_11 = arith.constant dense<0.000000e+00> : vector<8x16xf32>
    %11 = tpu.matmul %10, %8, %cst_11 {dimension_numbers = #tpu.dot_dimension_numbers<[1], [0], [0], [1], [0, 0, 1, 1], [], []>} : vector<8x4xbf16>, vector<4x16xbf16>, vector<8x16xf32> -> vector<8x16xf32>
    %12 = arith.addf %6, %11 : vector<8x16xf32>
    %c0_12 = arith.constant 0 : index
    %c0_13 = arith.constant 0 : index
    %c2 = arith.constant 2 : index
    %13 = vector.load %arg1[%c0_12, %c0_13, %c2] : memref<1x4x18xbf16, #tpu.memory_space<vmem>>, vector<1x4x16xbf16>
    %14 = vector.shape_cast %13 : vector<1x4x16xbf16> to vector<4x16xbf16>
    %c2_14 = arith.constant 2 : index
    %c0_15 = arith.constant 0 : index
    %c0_16 = arith.constant 0 : index
    %15 = vector.load %arg2[%c2_14, %c0_15, %c0_16] : memref<3x8x4xbf16, #tpu.memory_space<vmem>>, vector<1x8x4xbf16>
    %16 = vector.shape_cast %15 : vector<1x8x4xbf16> to vector<8x4xbf16>
    %cst_17 = arith.constant dense<0.000000e+00> : vector<8x16xf32>
    %17 = tpu.matmul %16, %14, %cst_17 {dimension_numbers = #tpu.dot_dimension_numbers<[1], [0], [0], [1], [0, 0, 1, 1], [], []>} : vector<8x4xbf16>, vector<4x16xbf16>, vector<8x16xf32> -> vector<8x16xf32>
    %18 = arith.addf %12, %17 : vector<8x16xf32>
    %c0_18 = arith.constant 0 : index
    %c0_19 = arith.constant 0 : index
    %19 = vector.load %arg3[%c0_18, %c0_19] : memref<8x1xf32, #tpu.memory_space<vmem>>, vector<8x1xf32>
    %20 = vector.broadcast %19 : vector<8x1xf32> to vector<8x16xf32>
    %21 = arith.mulf %18, %20 : vector<8x16xf32>
    %c0_20 = arith.constant 0 : index
    %c0_21 = arith.constant 0 : index
    %22 = vector.load %arg4[%c0_20, %c0_21] : memref<8x1xf32, #tpu.memory_space<vmem>>, vector<8x1xf32>
    %23 = vector.broadcast %22 : vector<8x1xf32> to vector<8x16xf32>
    %24 = arith.addf %21, %23 : vector<8x16xf32>
    %cst_22 = arith.constant 0.000000e+00 : f32
    %25 = vector.broadcast %cst_22 : f32 to vector<8x16xf32>
    %26 = arith.maximumf %24, %25 : vector<8x16xf32>
    %c0_23 = arith.constant 0 : index
    %c0_24 = arith.constant 0 : index
    %c0_25 = arith.constant 0 : index
    %27 = vector.load %arg5[%c0_23, %c0_24, %c0_25] : memref<1x8x16xf32, #tpu.memory_space<vmem>>, vector<1x8x16xf32>
    %28 = vector.shape_cast %27 : vector<1x8x16xf32> to vector<8x16xf32>
    %29 = vector.shape_cast %26 : vector<8x16xf32> to vector<1x8x16xf32>
    tpu.vector_store %arg5[%c0_23, %c0_24, %c0_25], %29 {strides = array<i32>} : memref<1x8x16xf32, #tpu.memory_space<vmem>>, vector<1x8x16xf32>,
    return
  }
  func.func @transform_0(%arg0: i32) -> (i32, i32, i32) {
    %c0_i32 = arith.constant 0 : i32
    %c0_i32_0 = arith.constant 0 : i32
    %c0_i32_1 = arith.constant 0 : i32
    return %arg0, %c0_i32, %c0_i32_0 : i32, i32, i32
  }
  func.func @transform_1(%arg0: i32) -> (i32, i32, i32) {
    %c0_i32 = arith.constant 0 : i32
    %c0_i32_0 = arith.constant 0 : i32
    %c0_i32_1 = arith.constant 0 : i32
    %c0_i32_2 = arith.constant 0 : i32
    return %c0_i32, %c0_i32_0, %c0_i32_1 : i32, i32, i32
  }
  func.func @transform_2(%arg0: i32) -> (i32, i32) {
    %c0_i32 = arith.constant 0 : i32
    %c0_i32_0 = arith.constant 0 : i32
    %c0_i32_1 = arith.constant 0 : i32
    return %c0_i32, %c0_i32_0 : i32, i32
  }
  func.func @transform_3(%arg0: i32) -> (i32, i32) {
    %c0_i32 = arith.constant 0 : i32
    %c0_i32_0 = arith.constant 0 : i32
    %c0_i32_1 = arith.constant 0 : i32
    return %c0_i32, %c0_i32_0 : i32, i32
  }
  func.func @transform_4(%arg0: i32) -> (i32, i32, i32) {
    %c0_i32 = arith.constant 0 : i32
    %c0_i32_0 = arith.constant 0 : i32
    %c0_i32_1 = arith.constant 0 : i32
    return %arg0, %c0_i32, %c0_i32_0 : i32, i32, i32
  }
}

</mosaic_0001>

<llo_original>
// kernel: tpu_custom_call.1
$region0: #{tpu_custom_call.1}
  #allocation0 [shape = 'u32[]', space=smem, size = 0x4, offset = 0x4, fixed_abs, tag = 'smem constant byte address 0x4 - core index']
  #allocation1 [shape = 'u32[144,128]{1,0:T(1,128)}', space=vmem, size = 0x12000, scoped, tag = 'internal scratch']
  %s0 = inlined_call_operand.vmem [shape: bf16[2,4,18], index: 0, kind: input, shape index: {}]
  %s1 = inlined_call_operand.vmem [shape: bf16[3,8,4], index: 1, kind: input, shape index: {}]
  %s2 = inlined_call_operand.vmem [shape: f32[8,1], index: 2, kind: input, shape index: {}]
  %s3 = inlined_call_operand.vmem [shape: f32[8,1], index: 3, kind: input, shape index: {}]
  %s4 = inlined_call_operand.hbm [shape: f32[2,8,16], index: 4, kind: output, shape index: {}]
  %s5 = sld [smem:[#allocation0]]
  $region49: #{tpu_custom_call.1} parent=0
    _
  %s7 = ssub.s32 1, %s5
  %s8 = scalar_select 0, %s7, %s5
  $region1: #{tpu_custom_call.1} parent=0
    #allocation2 [shape = 'u8[8192]{0}', space=vmem, size = 0x2000, scoped, tag = 'output window, operand 0']
    #allocation3 [shape = 's32[2]{0}', space=sflag, size = 0x8, scoped, tag = 'scoped memory for tpu_custom_call.1']
    %9 = vsyncpa [#allocation3], 0
    %s10 = scalar_lea.sflag [#allocation3], 1
    %11 = vsyncpa %s10, 0
    loop: start=0, step=1, limit=4
    $region2: #{tpu_custom_call.1} parent=1 // loop_pre_header
      _
    $region3: #{tpu_custom_call.1} parent=1 // loop_header
      %s13 = sphi 0, %s17
      %p14 = scmp.ge.s32.totalorder %s13, 4
      %s23 = sphi 0, %s25
      %s26 = sphi 0, %s23
      %s27 = sphi 0, %s26
      %s43 = sphi 0, %s27
      %s47 = sphi 0, %s47
      %s49 = sphi 0, %s47
      %s50 = sphi 0, %s49
      %s64 = sphi 0, %s50
      %s68 = sphi 0, %s68
      %s70 = sphi 0, %s68
      %s71 = sphi 0, %s70
      %s85 = sphi 0, %s71
      %s89 = sphi 0, %s89
      %s91 = sphi 0, %s89
      %s92 = sphi 0, %s91
      %s106 = sphi 0, %s92
      %s112 = sphi 0, %s114
      %s115 = sphi 0, %s112
      %s116 = sphi 0, %s115
      %s132 = sphi 0, %s116
    $region4: #{tpu_custom_call.1} parent=1 // loop_header_branch
      %16 = sbr.rel (%p14) target = $region8
    $region5: #{tpu_custom_call.1} parent=1 // loop_body
      %s18 = ssub.s32 %s13, 1
      %s19 = ssub.s32 %s13, 2
      %s20 = sadd.s32 %s13, 1
      %s21 = ssub.s32 %s13, %s20
      %p22 = scmp.eq.s32.totalorder %s21, 0
      %s24 = sadd.s32 %s23, 1
      %s25 = scalar_select %p22, %s23, %s24
      %p28 = pneg %p22
      %p29 = scmp.eq.s32.totalorder %s13, 1
      %p30 = por %p28, %p29
      %p31 = scmp.ne.s32.totalorder %s23, %s26
      %p32 = scmp.eq.s32.totalorder %s13, 0
      %p33 = por %p31, %p32
      %p34 = scmp.ne.s32.totalorder %s23, %s26
      %p35 = scmp.eq.s32.totalorder %s18, 1
      %p36 = por %p34, %p35
      %p37 = scmp.ne.s32.totalorder %s26, %s27
      %p38 = scmp.eq.s32.totalorder %s18, 0
      %p39 = por %p37, %p38
      %p40 = scmp.ne.s32.totalorder %s26, %s27
      %p41 = scmp.eq.s32.totalorder %s19, 1
      %p42 = por %p40, %p41
      %p44 = scmp.ne.s32.totalorder %s27, %s43
      %p45 = scmp.eq.s32.totalorder %s19, 0
      %p46 = por %p44, %p45
      %s48 = sadd.s32 %s47, 1
      %p51 = scmp.eq.s32.totalorder %s13, 1
      %p52 = scmp.ne.s32.totalorder %s47, %s49
      %p53 = scmp.eq.s32.totalorder %s13, 0
      %p54 = por %p52, %p53
      %p55 = scmp.ne.s32.totalorder %s47, %s49
      %p56 = scmp.eq.s32.totalorder %s18, 1
      %p57 = por %p55, %p56
      %p58 = scmp.ne.s32.totalorder %s49, %s50
      %p59 = scmp.eq.s32.totalorder %s18, 0
      %p60 = por %p58, %p59
      %p61 = scmp.ne.s32.totalorder %s49, %s50
      %p62 = scmp.eq.s32.totalorder %s19, 1
      %p63 = por %p61, %p62
      %p65 = scmp.ne.s32.totalorder %s50, %s64
      %p66 = scmp.eq.s32.totalorder %s19, 0
      %p67 = por %p65, %p66
      %s69 = sadd.s32 %s68, 1
      %p72 = scmp.eq.s32.totalorder %s13, 1
      %p73 = scmp.ne.s32.totalorder %s68, %s70
      %p74 = scmp.eq.s32.totalorder %s13, 0
      %p75 = por %p73, %p74
      %p76 = scmp.ne.s32.totalorder %s68, %s70
      %p77 = scmp.eq.s32.totalorder %s18, 1
      %p78 = por %p76, %p77
      %p79 = scmp.ne.s32.totalorder %s70, %s71
      %p80 = scmp.eq.s32.totalorder %s18, 0
      %p81 = por %p79, %p80
      %p82 = scmp.ne.s32.totalorder %s70, %s71
      %p83 = scmp.eq.s32.totalorder %s19, 1
      %p84 = por %p82, %p83
      %p86 = scmp.ne.s32.totalorder %s71, %s85
      %p87 = scmp.eq.s32.totalorder %s19, 0
      %p88 = por %p86, %p87
      %s90 = sadd.s32 %s89, 1
      %p93 = scmp.eq.s32.totalorder %s13, 1
      %p94 = scmp.ne.s32.totalorder %s89, %s91
      %p95 = scmp.eq.s32.totalorder %s13, 0
      %p96 = por %p94, %p95
      %p97 = scmp.ne.s32.totalorder %s89, %s91
      %p98 = scmp.eq.s32.totalorder %s18, 1
      %p99 = por %p97, %p98
      %p100 = scmp.ne.s32.totalorder %s91, %s92
      %p101 = scmp.eq.s32.totalorder %s18, 0
      %p102 = por %p100, %p101
      %p103 = scmp.ne.s32.totalorder %s91, %s92
      %p104 = scmp.eq.s32.totalorder %s19, 1
      %p105 = por %p103, %p104
      %p107 = scmp.ne.s32.totalorder %s92, %s106
      %p108 = scmp.eq.s32.totalorder %s19, 0
      %p109 = por %p107, %p108
      %s110 = ssub.s32 %s13, %s20
      %p111 = scmp.eq.s32.totalorder %s110, 0
      %s113 = sadd.s32 %s112, 1
      %s114 = scalar_select %p111, %s112, %s113
      %p117 = pneg %p111
      %p118 = scmp.eq.s32.totalorder %s13, 1
      %p119 = por %p117, %p118
      %p120 = scmp.ne.s32.totalorder %s112, %s115
      %p121 = scmp.eq.s32.totalorder %s13, 0
      %p122 = por %p120, %p121
      %p123 = scmp.ne.s32.totalorder %s112, %s115
      %p124 = scmp.eq.s32.totalorder %s18, 1
      %p125 = por %p123, %p124
      %p126 = scmp.ne.s32.totalorder %s115, %s116
      %p127 = scmp.eq.s32.totalorder %s18, 0
      %p128 = por %p126, %p127
      %p129 = scmp.ne.s32.totalorder %s115, %s116
      %p130 = scmp.eq.s32.totalorder %s19, 1
      %p131 = por %p129, %p130
      %p133 = scmp.ne.s32.totalorder %s116, %s132
      %p134 = scmp.eq.s32.totalorder %s19, 0
      %p135 = por %p133, %p134
      %p136 = scmp.le.s32.totalorder 1, %s13
      %p137 = scmp.lt.s32.totalorder %s13, 3
      %p138 = pnand %p136, %p137
      %p139 = pneg %p138
      // Predicated region
      $region9: #{tpu_custom_call.1} parent=5 // pred_check
        _
      $region10: #{tpu_custom_call.1} parent=5 // pred_check_branch
        %141 = sbr.rel (%p138) target = $region12
      $region11: #{tpu_custom_call.1} parent=5 // pred_region
        %s142 = ssub.s32 %s13, 1
        // Predicated region
        $region13: #{tpu_custom_call.1} parent=11 // pred_check
          %p143 = pneg %p60
        $region14: #{tpu_custom_call.1} parent=11 // pred_check_branch
          %145 = sbr.rel (%p143) target = $region16
        $region15: #{tpu_custom_call.1} parent=11 // pred_region
          _
        $region16: #{tpu_custom_call.1} parent=11 // pred_fallthru
          _
        // Predicated region
        $region17: #{tpu_custom_call.1} parent=11 // pred_check
          %p146 = pneg %p81
        $region18: #{tpu_custom_call.1} parent=11 // pred_check_branch
          %148 = sbr.rel (%p146) target = $region20
        $region19: #{tpu_custom_call.1} parent=11 // pred_region
          _
        $region20: #{tpu_custom_call.1} parent=11 // pred_fallthru
          _
        // Predicated region
        $region21: #{tpu_custom_call.1} parent=11 // pred_check
          %p149 = pneg %p102
        $region22: #{tpu_custom_call.1} parent=11 // pred_check_branch
          %151 = sbr.rel (%p149) target = $region24
        $region23: #{tpu_custom_call.1} parent=11 // pred_region
          _
        $region24: #{tpu_custom_call.1} parent=11 // pred_fallthru
          _
      $region12: #{tpu_custom_call.1} parent=5 // pred_fallthru
        _
      %p152 = scmp.lt.s32.totalorder %s13, 2
      // Predicated region
      $region25: #{tpu_custom_call.1} parent=5 // pred_check
        %p153 = pneg %p152
      $region26: #{tpu_custom_call.1} parent=5 // pred_check_branch
        %155 = sbr.rel (%p153) target = $region28
      $region27: #{tpu_custom_call.1} parent=5 // pred_region
        // Predicated region
        $region29: #{tpu_custom_call.1} parent=27 // pred_check
          %p156 = pneg %p33
        $region30: #{tpu_custom_call.1} parent=27 // pred_check_branch
          %158 = sbr.rel (%p156) target = $region32
        $region31: #{tpu_custom_call.1} parent=27 // pred_region
          %p159 = scmp.lt.s32.totalorder %s13, 1
          %s160 = scalar_select %p159, %s13, 1
          %s161 = smul.addr %s160, 2
          %s162 = scalar_lea.vmem %s0, %s161
        $region32: #{tpu_custom_call.1} parent=27 // pred_fallthru
          _
      $region28: #{tpu_custom_call.1} parent=5 // pred_fallthru
        _
      %p163 = scmp.le.s32.totalorder 1, %s13
      %p164 = scmp.lt.s32.totalorder %s13, 3
      %p165 = pnand %p163, %p164
      %p166 = pneg %p165
      // Predicated region
      $region33: #{tpu_custom_call.1} parent=5 // pred_check
        _
      $region34: #{tpu_custom_call.1} parent=5 // pred_check_branch
        %168 = sbr.rel (%p165) target = $region36
      $region35: #{tpu_custom_call.1} parent=5 // pred_region
        %s169 = ssub.s32 %s13, 1
        %p170 = scmp.lt.s32.totalorder %s18, 1
        %s171 = scalar_select %p170, %s18, 1
        %s172 = smul.addr %s171, 2
        %s173 = scalar_lea.vmem %s0, %s172
        %p174 = pneg %p39
        %p175 = pneg %p36
        %p176 = pneg %p60
        %p177 = pneg %p57
        %p178 = pneg %p81
        %p179 = pneg %p78
        %p180 = pneg %p102
        %p181 = pneg %p99
        %p182 = pneg %p128
        %p183 = pneg %p125
        %s184 = sand.u32 %s115, 1
        %s185 = scalar_lea.sflag [#allocation3], %s184
        %s186 = sand.u32 %s115, 1
        %s187 = smul.addr %s186, 8
        %s188 = scalar_lea.vmem [#allocation2], %s187
        %p189 = scmp.lt.s32.totalorder %s18, 1
        %s190 = scalar_select %p189, %s18, 1
        %s191 = smul.addr %s190, 2
        %s192 = scalar_lea.vmem %s0, %s191
        %v194 = vld [vmem:[%s192] sm:$0x3]
        %v195 = vld [vmem:[%s1] sm:$0xf]
        %s196 = scalar_lea.vmem %s1, 4
        %v197 = vld [vmem:[%s196] sm:$0xf]
        %v200 = vunpack.c.l.s4 1983009808
        %v201 = vunpack.c.0.s8 %v200
        %v202 = vlaneseq
        %v203 = vshrl.u32 %v202, 7
        %v204 = vsub.s32 %v201, %v203
        %v205 = vrot.slane %v194, %v204
        %206 = vrot.lane.b32.xlu0 %v205, 127
        %v207 = vpop.permute.xlu0 %206
        %vm208 = vcmask 31744
        %v210 = vsel %vm208, %v197, 0
        %vm212 = vcmask 1041408
        %v214 = vsel %vm212, %v207, 0
        %216 = vmatprep.subr.bf16.mxu0 0
        %217 = vmatpush1.bf16.msra.mxu0 %v214
        %218 = vmatprep.subr.bf16.mxu0 0
        %219 = vmatpush1.bf16.msra.mxu0 0
        %220 = vmatprep.subr.bf16.mxu0 0
        %221 = vmatpush1.bf16.msra.mxu0 0
        %222 = vmatprep.subr.bf16.mxu0 0
        %223 = vmatpush1.bf16.msra.mxu0 0
        %224 = vmatprep.subr.bf16.mxu0 0
        %225 = vmatpush1.bf16.msra.mxu0 0
        %226 = vmatprep.subr.bf16.mxu0 0
        %227 = vmatpush1.bf16.msra.mxu0 0
        %228 = vmatprep.subr.bf16.mxu0 0
        %229 = vmatpush1.bf16.msra.mxu0 0
        %230 = vmatprep.subr.bf16.mxu0 0
        %231 = vmatpush1.bf16.msra.mxu0 0
        %232 = vmatprep.subr.bf16.mxu0 0
        %233 = vmatpush1.bf16.msra.mxu0 0
        %234 = vmatprep.subr.bf16.mxu0 0
        %235 = vmatpush1.bf16.msra.mxu0 0
        %236 = vmatprep.subr.bf16.mxu0 0
        %237 = vmatpush1.bf16.msra.mxu0 0
        %238 = vmatprep.subr.bf16.mxu0 0
        %239 = vmatpush1.bf16.msra.mxu0 0
        %240 = vmatprep.subr.bf16.mxu0 0
        %241 = vmatpush1.bf16.msra.mxu0 0
        %242 = vmatprep.subr.bf16.mxu0 0
        %243 = vmatpush1.bf16.msra.mxu0 0
        %244 = vmatprep.subr.bf16.mxu0 0
        %245 = vmatpush1.bf16.msra.mxu0 0
        %246 = vmatprep.subr.bf16.mxu0 0
        %247 = vmatpush1.bf16.msra.mxu0 0
        %248 = vmatprep.mubr.bf16.mxu0 0
        %249 = vmatmul.mubr.bf16.gmra.mrb[0].mxu0 %v210
        %v250 = vpop.f32.mrb[0].mxu0
        %v251 = vadd.f32 0.0, %v250
        %v252 = vpop.f32.mrb[0].mxu0
        %v253 = vpop.f32.mrb[0].mxu0
        %v254 = vpop.f32.mrb[0].mxu0
        %255 = vdwg.mxu0
        %v257 = vsel %vm208, %v195, 0
        %v260 = vsel %vm212, %v194, 0
        %262 = vmatprep.subr.bf16.mxu0 0
        %263 = vmatpush1.bf16.msra.mxu0 %v260
        %264 = vmatprep.subr.bf16.mxu0 0
        %265 = vmatpush1.bf16.msra.mxu0 0
        %266 = vmatprep.subr.bf16.mxu0 0
        %267 = vmatpush1.bf16.msra.mxu0 0
        %268 = vmatprep.subr.bf16.mxu0 0
        %269 = vmatpush1.bf16.msra.mxu0 0
        %270 = vmatprep.subr.bf16.mxu0 0
        %271 = vmatpush1.bf16.msra.mxu0 0
        %272 = vmatprep.subr.bf16.mxu0 0
        %273 = vmatpush1.bf16.msra.mxu0 0
        %274 = vmatprep.subr.bf16.mxu0 0
        %275 = vmatpush1.bf16.msra.mxu0 0
        %276 = vmatprep.subr.bf16.mxu0 0
        %277 = vmatpush1.bf16.msra.mxu0 0
        %278 = vmatprep.subr.bf16.mxu0 0
        %279 = vmatpush1.bf16.msra.mxu0 0
        %280 = vmatprep.subr.bf16.mxu0 0
        %281 = vmatpush1.bf16.msra.mxu0 0
        %282 = vmatprep.subr.bf16.mxu0 0
        %283 = vmatpush1.bf16.msra.mxu0 0
        %284 = vmatprep.subr.bf16.mxu0 0
        %285 = vmatpush1.bf16.msra.mxu0 0
        %286 = vmatprep.subr.bf16.mxu0 0
        %287 = vmatpush1.bf16.msra.mxu0 0
        %288 = vmatprep.subr.bf16.mxu0 0
        %289 = vmatpush1.bf16.msra.mxu0 0
        %290 = vmatprep.subr.bf16.mxu0 0
        %291 = vmatpush1.bf16.msra.mxu0 0
        %292 = vmatprep.subr.bf16.mxu0 0
        %293 = vmatpush1.bf16.msra.mxu0 0
        %294 = vmatprep.mubr.bf16.mxu0 0
        %295 = vmatmul.mubr.bf16.gmra.mrb[0].mxu0 %v257
        %v296 = vpop.f32.mrb[0].mxu0
        %v297 = vadd.f32 %v251, %v296
        %v298 = vpop.f32.mrb[0].mxu0
        %v299 = vpop.f32.mrb[0].mxu0
        %v300 = vpop.f32.mrb[0].mxu0
        %301 = vdwg.mxu0
        %v302 = vld [vmem:[%s192] sm:$0x3]
        %s303 = scalar_lea.vmem %s1, 8
        %v304 = vld [vmem:[%s303] sm:$0xf]
        %v307 = vunpack.c.l.s4 1983009808
        %v308 = vunpack.c.0.s8 %v307
        %v309 = vlaneseq
        %v310 = vshrl.u32 %v309, 7
        %v311 = vsub.s32 %v308, %v310
        %v312 = vrot.slane %v302, %v311
        %313 = vrot.lane.b32.xlu0 %v312, 126
        %v314 = vpop.permute.xlu0 %313
        %v316 = vsel %vm208, %v304, 0
        %v319 = vsel %vm212, %v314, 0
        %321 = vmatprep.subr.bf16.mxu0 0
        %322 = vmatpush1.bf16.msra.mxu0 %v319
        %323 = vmatprep.subr.bf16.mxu0 0
        %324 = vmatpush1.bf16.msra.mxu0 0
        %325 = vmatprep.subr.bf16.mxu0 0
        %326 = vmatpush1.bf16.msra.mxu0 0
        %327 = vmatprep.subr.bf16.mxu0 0
        %328 = vmatpush1.bf16.msra.mxu0 0
        %329 = vmatprep.subr.bf16.mxu0 0
        %330 = vmatpush1.bf16.msra.mxu0 0
        %331 = vmatprep.subr.bf16.mxu0 0
        %332 = vmatpush1.bf16.msra.mxu0 0
        %333 = vmatprep.subr.bf16.mxu0 0
        %334 = vmatpush1.bf16.msra.mxu0 0
        %335 = vmatprep.subr.bf16.mxu0 0
        %336 = vmatpush1.bf16.msra.mxu0 0
        %337 = vmatprep.subr.bf16.mxu0 0
        %338 = vmatpush1.bf16.msra.mxu0 0
        %339 = vmatprep.subr.bf16.mxu0 0
        %340 = vmatpush1.bf16.msra.mxu0 0
        %341 = vmatprep.subr.bf16.mxu0 0
        %342 = vmatpush1.bf16.msra.mxu0 0
        %343 = vmatprep.subr.bf16.mxu0 0
        %344 = vmatpush1.bf16.msra.mxu0 0
        %345 = vmatprep.subr.bf16.mxu0 0
        %346 = vmatpush1.bf16.msra.mxu0 0
        %347 = vmatprep.subr.bf16.mxu0 0
        %348 = vmatpush1.bf16.msra.mxu0 0
        %349 = vmatprep.subr.bf16.mxu0 0
        %350 = vmatpush1.bf16.msra.mxu0 0
        %351 = vmatprep.subr.bf16.mxu0 0
        %352 = vmatpush1.bf16.msra.mxu0 0
        %353 = vmatprep.mubr.bf16.mxu0 0
        %354 = vmatmul.mubr.bf16.gmra.mrb[0].mxu0 %v316
        %v355 = vpop.f32.mrb[0].mxu0
        %v356 = vadd.f32 0.0, %v355
        %v357 = vpop.f32.mrb[0].mxu0
        %v358 = vpop.f32.mrb[0].mxu0
        %v359 = vpop.f32.mrb[0].mxu0
        %360 = vdwg.mxu0
        %v361 = vadd.f32 %v297, %v356
        %v362 = vld [vmem:[%s2] sm:$0xff]
        %364 = vset.pattern.permute.xlu0 0
        %365 = vperm.xlu0 %364, %v362
        %v366 = vpop.permute.xlu0 %365
        %v368 = vmul.f32 %v361, %v366
        %v369 = vld [vmem:[%s3] sm:$0xff]
        %371 = vset.pattern.permute.xlu0 0
        %372 = vperm.xlu0 %371, %v369
        %v373 = vpop.permute.xlu0 %372
        %v375 = vadd.f32 %v368, %v373
        %v376 = vmax.f32 %v375, 0.0
        %vm377 = vcmask 130048
        %378 = vst.msk [vmem:[%s188] sm:$0xff] %vm377, %v376
        %s379 = sand.u32 %s115, 1
        %s380 = scalar_lea.sflag [#allocation3], %s379
        %s381 = sand.u32 %s115, 1
        %s382 = smul.addr %s381, 8
        %s383 = scalar_lea.vmem [#allocation2], %s382
        // Predicated region
        $region37: #{tpu_custom_call.1} parent=35 // pred_check
          %p384 = pneg %p125
        $region38: #{tpu_custom_call.1} parent=35 // pred_check_branch
          %386 = sbr.rel (%p384) target = $region40
        $region39: #{tpu_custom_call.1} parent=35 // pred_region
          %s388 = ssub.s32 128, 128
          %389 = vsyncadd %s380, %s388
          %s390 = smul.addr %s18, 128
          %s391 = scalar_lea.hbm %s4, %s390
          %s393 = sshll.u32 %s383, 4
          %s394 = int_to_ptr.vmem [resolvable:$true] %s393
          %396 = dma.vmem_to_hbm [thread:$0]  %s394, 128, %s391, %s380
        $region40: #{tpu_custom_call.1} parent=35 // pred_fallthru
          _
      $region36: #{tpu_custom_call.1} parent=5 // pred_fallthru
        _
      %p397 = scmp.le.s32.totalorder 2, %s13
      // Predicated region
      $region41: #{tpu_custom_call.1} parent=5 // pred_check
        %p398 = pneg %p397
      $region42: #{tpu_custom_call.1} parent=5 // pred_check_branch
        %400 = sbr.rel (%p398) target = $region44
      $region43: #{tpu_custom_call.1} parent=5 // pred_region
        %s401 = ssub.s32 %s13, 2
        // Predicated region
        $region45: #{tpu_custom_call.1} parent=43 // pred_check
          %p402 = pneg %p131
        $region46: #{tpu_custom_call.1} parent=43 // pred_check_branch
          %404 = sbr.rel (%p402) target = $region48
        $region47: #{tpu_custom_call.1} parent=43 // pred_region
          %s405 = sand.u32 %s116, 1
          %s406 = scalar_lea.sflag [#allocation3], %s405
          %s407 = sand.u32 %s116, 1
          %s408 = smul.addr %s407, 8
          %s409 = scalar_lea.vmem [#allocation2], %s408
          %410 = dma.done %s406, 128
        $region48: #{tpu_custom_call.1} parent=43 // pred_fallthru
          _
      $region44: #{tpu_custom_call.1} parent=5 // pred_fallthru
        _
    $region6: #{tpu_custom_call.1} parent=1 // loop_footer
      %s17 = sadd.s32 1, %s13
    $region7: #{tpu_custom_call.1} parent=1 // loop_footer_branch
      %12 = sbr.rel target = $region3
    $region8: #{tpu_custom_call.1} parent=1 // loop_exit
      _
    %411 = vsyncpa [#allocation3], 1
    %s412 = scalar_lea.sflag [#allocation3], 1
    %413 = vsyncpa %s412, 1

</llo_original>
